<compile_context>
chip_gen: v5e
topology: v5e:2x2
jax: 0.10.0
libtpu: 0.0.40
codegen_flags: <defaults>
</compile_context>

<pallas_src>
import functools

import jax
import jax.numpy as jnp
import numpy as np
from jax import lax
from jax.experimental import pallas as pl
from jax.experimental.pallas import tpu as pltpu


# ---------------------------------------------------------------------------
# Fused kernel: BN1 + ReLU + conv1x1 + BN2 + ReLU + conv3x3 (+ dropout) + concat
# Layout inside the kernel: (channels, H*W)  — channels on sublanes, flat
# spatial on lanes (lane-dense).
# ---------------------------------------------------------------------------
def _dense_layer_kernel(x_ref, row_ref, col_ref, s1_ref, b1_ref, w1_ref,
                        s2_ref, b2_ref, w2_ref, o_ref, *, H, W,
                        drop_rate, training, seed):
    # x_ref : (1, C_in, L)        f32, L = H*W
    # row_ref/col_ref: (1, L)     i32 spatial row / col index per lane
    # s1,b1 : (C_in, 1)           f32 folded BN1 scale/bias
    # w1_ref: (C_mid, C_in)       bf16 (transposed 1x1 weight)
    # s2,b2 : (C_mid, 1)          f32 folded BN2 scale/bias
    # w2_ref: (C_out, 9*C_mid)    bf16 (tap-major flattened 3x3 weight)
    # o_ref : (1, C_out+C_in, L)  f32
    C_out = w2_ref.shape[0]
    L = x_ref.shape[-1]

    x = x_ref[0]                                           # (C_in, L) f32
    row = row_ref[...]                                     # (1, L) i32
    col = col_ref[...]                                     # (1, L) i32

    # ---- BN1 + ReLU -> 1x1 conv (MXU, bf16 operands / f32 acc) -> BN2 + ReLU
    y1 = jnp.maximum(x * s1_ref[...] + b1_ref[...], 0.0)
    h = jnp.dot(w1_ref[...], y1.astype(jnp.bfloat16),
                preferred_element_type=jnp.float32)        # (C_mid, L)
    y2 = jnp.maximum(h * s2_ref[...] + b2_ref[...], 0.0)   # (C_mid, L) f32

    # ---- 3x3 conv as ONE matmul: im2col stack along the contraction dim. ----
    # Each tap (dh, dw) needs y2 at flat index q + dh*W + dw, valid only when
    # (row+dh, col+dw) stays inside the image (zero padding elsewhere).
    # The shift is a lane roll (XLU); the validity mask zeros the wrapped /
    # out-of-image lanes, so the roll never leaks data across rows or images.
    taps = []
    for dh in (-1, 0, 1):
        row_ok = (row + dh >= 0) & (row + dh <= H - 1)
        for dw in (-1, 0, 1):
            ok = row_ok & (col + dw >= 0) & (col + dw <= W - 1)
            shift = (-(dh * W + dw)) % L
            shifted = y2 if shift == 0 else pltpu.roll(y2, shift=shift, axis=1)
            taps.append(jnp.where(ok, shifted, 0.0))
    y_stack = jnp.concatenate(taps, axis=0).astype(jnp.bfloat16)   # (9*C_mid, L)
    out = jnp.dot(w2_ref[...], y_stack,
                  preferred_element_type=jnp.float32)              # (C_out, L)

    if drop_rate > 0.0 and training:
        # TODO(synk): RNG stream differs from torch.nn.functional.dropout; only
        # the Bernoulli-mask semantics are reproduced (1/(1-p) keep-scale is
        # folded into w2 in the wrapper).  Bits are drawn lane-dense.
        pltpu.prng_seed(seed + pl.program_id(0))
        bits = pltpu.bitcast(pltpu.prng_random_bits((C_out, L)), jnp.uint32)
        thr = jnp.uint32(min(int(drop_rate * (1 << 32)), (1 << 32) - 1))
        out = jnp.where(bits >= thr, out, 0.0)

    # ---- fused dense connection: torch.cat([out, x], dim=1) -----------------
    o_ref[0, :C_out, :] = out.astype(o_ref.dtype)
    o_ref[0, C_out:, :] = x


# ---------------------------------------------------------------------------
# Wrapper
# ---------------------------------------------------------------------------
@functools.partial(jax.jit,
                   static_argnames=("drop_rate", "training", "eps", "seed"))
def dense_layer_forward(x_nchw, params, *, drop_rate=0.0, training=False,
                        eps=1e-5, seed=0):
    N, C_in, H, W = x_nchw.shape
    L = H * W
    # NCHW is already channels-on-sublane / spatial-on-lane: free reshape only.
    x = x_nchw.astype(jnp.float32).reshape(N, C_in, L)

    # Fold BN (eval-mode running stats) into scale/bias.
    # TODO(synk): training-mode BatchNorm (batch statistics) not implemented.
    s1 = params["gamma1"] / jnp.sqrt(params["var1"] + eps)
    b1 = params["beta1"] - params["mean1"] * s1
    s2 = params["gamma2"] / jnp.sqrt(params["var2"] + eps)
    b2 = params["beta2"] - params["mean2"] * s2

    w1t = params["w1"].T.astype(jnp.bfloat16)              # (C_mid, C_in)
    w2 = params["w2"]                                      # (3,3,C_mid,C_out) HWIO
    C_mid = w1t.shape[0]
    C_out = w2.shape[-1]
    C_total = C_out + C_in
    if drop_rate > 0.0 and training:
        w2 = w2 * (1.0 / (1.0 - drop_rate))                # fold dropout keep-scale
    # Tap-major flatten: column block t = kh*3+kw holds w2[kh, kw].T
    w2f = jnp.transpose(w2, (3, 0, 1, 2)).reshape(C_out, 9 * C_mid)
    w2f = w2f.astype(jnp.bfloat16)

    # Per-lane spatial indices for the in-kernel tap-validity masks (avoids
    # in-kernel integer div/mod).
    qidx = jnp.arange(L, dtype=jnp.int32)
    row_ids = (qidx // W).reshape(1, L)
    col_ids = (qidx % W).reshape(1, L)

    kernel = functools.partial(_dense_layer_kernel, H=H, W=W,
                               drop_rate=float(drop_rate),
                               training=bool(training), seed=int(seed))

    out = pl.pallas_call(
        kernel,
        out_shape=jax.ShapeDtypeStruct((N, C_total, L), jnp.float32),
        grid=(N,),
        in_specs=[
            pl.BlockSpec((1, C_in, L), lambda n: (n, 0, 0)),
            pl.BlockSpec((1, L), lambda n: (0, 0)),
            pl.BlockSpec((1, L), lambda n: (0, 0)),
            pl.BlockSpec((C_in, 1), lambda n: (0, 0)),
            pl.BlockSpec((C_in, 1), lambda n: (0, 0)),
            pl.BlockSpec((C_mid, C_in), lambda n: (0, 0)),
            pl.BlockSpec((C_mid, 1), lambda n: (0, 0)),
            pl.BlockSpec((C_mid, 1), lambda n: (0, 0)),
            pl.BlockSpec((C_out, 9 * C_mid), lambda n: (0, 0)),
        ],
        out_specs=pl.BlockSpec((1, C_total, L), lambda n: (n, 0, 0)),
        compiler_params=pltpu.CompilerParams(
            dimension_semantics=("parallel",),
            # Tiny tiles here; re-derive for large H*W / C_in (v7x: 64 MiB VMEM).
            vmem_limit_bytes=32 * 1024 * 1024),
    )(x, row_ids, col_ids,
      s1.reshape(C_in, 1), b1.reshape(C_in, 1), w1t,
      s2.reshape(C_mid, 1), b2.reshape(C_mid, 1), w2f)

    # Free metadata reshape back to NCHW; concat is already done in-kernel.
    return out.reshape(N, C_total, H, W)


# ---------------------------------------------------------------------------
# Pure-JAX f32 reference (for correctness check)
# ---------------------------------------------------------------------------
def dense_layer_ref(x_nchw, params, *, eps=1e-5):
    x = jnp.transpose(x_nchw, (0, 2, 3, 1)).astype(jnp.float32)
    s1 = params["gamma1"] / jnp.sqrt(params["var1"] + eps)
    b1 = params["beta1"] - params["mean1"] * s1
    s2 = params["gamma2"] / jnp.sqrt(params["var2"] + eps)
    b2 = params["beta2"] - params["mean2"] * s2
    y1 = jnp.maximum(x * s1 + b1, 0.0)
    hmid = jnp.einsum("nhwc,cd->nhwd", y1, params["w1"])
    y2 = jnp.maximum(hmid * s2 + b2, 0.0)
    out = lax.conv_general_dilated(
        y2, params["w2"], window_strides=(1, 1), padding="SAME",
        dimension_numbers=("NHWC", "HWIO", "NHWC"))
    cat = jnp.concatenate([out, x], axis=-1)
    return jnp.transpose(cat, (0, 3, 1, 2))


# ---------------------------------------------------------------------------
def make_params(key, c_in, grow_rate, bn_size):
    c_mid = bn_size * grow_rate
    ks = jax.random.split(key, 10)
    return {
        "gamma1": jax.random.uniform(ks[0], (c_in,), jnp.float32, 0.5, 1.5),
        "beta1":  jax.random.normal(ks[1], (c_in,), jnp.float32) * 0.1,
        "mean1":  jax.random.normal(ks[2], (c_in,), jnp.float32) * 0.1,
        "var1":   jax.random.uniform(ks[3], (c_in,), jnp.float32, 0.5, 1.5),
        "w1":     jax.random.normal(ks[4], (c_in, c_mid), jnp.float32)
                  / np.sqrt(c_in),
        "gamma2": jax.random.uniform(ks[5], (c_mid,), jnp.float32, 0.5, 1.5),
        "beta2":  jax.random.normal(ks[6], (c_mid,), jnp.float32) * 0.1,
        "mean2":  jax.random.normal(ks[7], (c_mid,), jnp.float32) * 0.1,
        "var2":   jax.random.uniform(ks[8], (c_mid,), jnp.float32, 0.5, 1.5),
        "w2":     jax.random.normal(ks[9], (3, 3, c_mid, grow_rate),
                                    jnp.float32) / np.sqrt(9 * c_mid),
    }


if __name__ == "__main__":
    # DenseLayer(input_features_num=4, grow_rate=8, bn_size=2, drop_rate=0.0)
    input_features_num, grow_rate, bn_size, drop_rate = 4, 8, 2, 0.0
    N, H, W = 2, 16, 16

    key = jax.random.PRNGKey(0)
    k_x, k_p = jax.random.split(key)
    x = jax.random.normal(k_x, (N, input_features_num, H, W), jnp.float32)
    params = make_params(k_p, input_features_num, grow_rate, bn_size)

    out = dense_layer_forward(x, params, drop_rate=drop_rate, training=False)
    out = jax.block_until_ready(out)

    ref = dense_layer_ref(x, params)
    assert out.shape == (N, grow_rate + input_features_num, H, W), out.shape
    # Tolerance reflects bf16 MXU operands (f32 accumulation) vs. f32 reference.
    np.testing.assert_allclose(np.asarray(out), np.asarray(ref),
                               rtol=3e-2, atol=3e-2)
    print("KERNEL_OK")
</pallas_src>

<mosaic_0001>
module attributes {stable_mosaic.version = 11 : i64} {
  func.func @_dense_layer_kernel(%arg0: i32, %arg1: memref<1x4x256xf32, #tpu.memory_space<vmem>>, %arg2: memref<1x256xi32, #tpu.memory_space<vmem>>, %arg3: memref<1x256xi32, #tpu.memory_space<vmem>>, %arg4: memref<4x1xf32, #tpu.memory_space<vmem>>, %arg5: memref<4x1xf32, #tpu.memory_space<vmem>>, %arg6: memref<16x4xbf16, #tpu.memory_space<vmem>>, %arg7: memref<16x1xf32, #tpu.memory_space<vmem>>, %arg8: memref<16x1xf32, #tpu.memory_space<vmem>>, %arg9: memref<8x144xbf16, #tpu.memory_space<vmem>>, %arg10: memref<1x12x256xf32, #tpu.memory_space<vmem>>) attributes {dimension_semantics = [#tpu.dimension_semantics<parallel>], iteration_bounds = array<i64: 2>, scalar_prefetch = 0 : i64, scratch_operands = 0 : i64, tpu.core_type = #tpu.core_type<tc>, window_params = [{transform_indices = @transform_0, window_bounds = array<i64: 1, 4, 256>}, {pipeline_mode = #tpu.pipeline_mode<synchronous>, transform_indices = @transform_1, window_bounds = array<i64: 1, 256>}, {pipeline_mode = #tpu.pipeline_mode<synchronous>, transform_indices = @transform_2, window_bounds = array<i64: 1, 256>}, {pipeline_mode = #tpu.pipeline_mode<synchronous>, transform_indices = @transform_3, window_bounds = array<i64: 4, 1>}, {pipeline_mode = #tpu.pipeline_mode<synchronous>, transform_indices = @transform_4, window_bounds = array<i64: 4, 1>}, {pipeline_mode = #tpu.pipeline_mode<synchronous>, transform_indices = @transform_5, window_bounds = array<i64: 16, 4>}, {pipeline_mode = #tpu.pipeline_mode<synchronous>, transform_indices = @transform_6, window_bounds = array<i64: 16, 1>}, {pipeline_mode = #tpu.pipeline_mode<synchronous>, transform_indices = @transform_7, window_bounds = array<i64: 16, 1>}, {pipeline_mode = #tpu.pipeline_mode<synchronous>, transform_indices = @transform_8, window_bounds = array<i64: 8, 144>}, {transform_indices = @transform_9, window_bounds = array<i64: 1, 12, 256>}]} {
    %c0 = arith.constant 0 : index
    %c0_0 = arith.constant 0 : index
    %c0_1 = arith.constant 0 : index
    %0 = vector.load %arg1[%c0, %c0_0, %c0_1] : memref<1x4x256xf32, #tpu.memory_space<vmem>>, vector<1x4x256xf32>
    %1 = vector.shape_cast %0 : vector<1x4x256xf32> to vector<4x256xf32>
    %c0_2 = arith.constant 0 : index
    %c0_3 = arith.constant 0 : index
    %2 = vector.load %arg2[%c0_2, %c0_3] : memref<1x256xi32, #tpu.memory_space<vmem>>, vector<1x256xi32>
    %c0_4 = arith.constant 0 : index
    %c0_5 = arith.constant 0 : index
    %3 = vector.load %arg3[%c0_4, %c0_5] : memref<1x256xi32, #tpu.memory_space<vmem>>, vector<1x256xi32>
    %c0_6 = arith.constant 0 : index
    %c0_7 = arith.constant 0 : index
    %4 = vector.load %arg4[%c0_6, %c0_7] : memref<4x1xf32, #tpu.memory_space<vmem>>, vector<4x1xf32>
    %5 = vector.broadcast %4 : vector<4x1xf32> to vector<4x256xf32>
    %6 = arith.mulf %1, %5 : vector<4x256xf32>
    %c0_8 = arith.constant 0 : index
    %c0_9 = arith.constant 0 : index
    %7 = vector.load %arg5[%c0_8, %c0_9] : memref<4x1xf32, #tpu.memory_space<vmem>>, vector<4x1xf32>
    %8 = vector.broadcast %7 : vector<4x1xf32> to vector<4x256xf32>
    %9 = arith.addf %6, %8 : vector<4x256xf32>
    %cst = arith.constant 0.000000e+00 : f32
    %10 = vector.broadcast %cst : f32 to vector<4x256xf32>
    %11 = arith.maximumf %9, %10 : vector<4x256xf32>
    %c0_10 = arith.constant 0 : index
    %c0_11 = arith.constant 0 : index
    %12 = vector.load %arg6[%c0_10, %c0_11] : memref<16x4xbf16, #tpu.memory_space<vmem>>, vector<16x4xbf16>
    %13 = arith.truncf %11 : vector<4x256xf32> to vector<4x256xbf16>
    %cst_12 = arith.constant dense<0.000000e+00> : vector<16x256xf32>
    %14 = tpu.matmul %12, %13, %cst_12 {dimension_numbers = #tpu.dot_dimension_numbers<[1], [0], [0], [1], [0, 0, 1, 1], [], []>} : vector<16x4xbf16>, vector<4x256xbf16>, vector<16x256xf32> -> vector<16x256xf32>
    %c0_13 = arith.constant 0 : index
    %c0_14 = arith.constant 0 : index
    %15 = vector.load %arg7[%c0_13, %c0_14] : memref<16x1xf32, #tpu.memory_space<vmem>>, vector<16x1xf32>
    %16 = vector.broadcast %15 : vector<16x1xf32> to vector<16x256xf32>
    %17 = arith.mulf %14, %16 : vector<16x256xf32>
    %c0_15 = arith.constant 0 : index
    %c0_16 = arith.constant 0 : index
    %18 = vector.load %arg8[%c0_15, %c0_16] : memref<16x1xf32, #tpu.memory_space<vmem>>, vector<16x1xf32>
    %19 = vector.broadcast %18 : vector<16x1xf32> to vector<16x256xf32>
    %20 = arith.addf %17, %19 : vector<16x256xf32>
    %cst_17 = arith.constant 0.000000e+00 : f32
    %21 = vector.broadcast %cst_17 : f32 to vector<16x256xf32>
    %22 = arith.maximumf %20, %21 : vector<16x256xf32>
    %c-1_i32 = arith.constant -1 : i32
    %23 = vector.broadcast %c-1_i32 : i32 to vector<1x256xi32>
    %24 = arith.addi %2, %23 : vector<1x256xi32>
    %c0_i32 = arith.constant 0 : i32
    %25 = vector.broadcast %c0_i32 : i32 to vector<1x256xi32>
    %26 = arith.cmpi sge, %24, %25 : vector<1x256xi32>
    %c-1_i32_18 = arith.constant -1 : i32
    %27 = vector.broadcast %c-1_i32_18 : i32 to vector<1x256xi32>
    %28 = arith.addi %2, %27 : vector<1x256xi32>
    %c15_i32 = arith.constant 15 : i32
    %29 = vector.broadcast %c15_i32 : i32 to vector<1x256xi32>
    %30 = arith.cmpi sle, %28, %29 : vector<1x256xi32>
    %31 = arith.andi %26, %30 : vector<1x256xi1>
    %c-1_i32_19 = arith.constant -1 : i32
    %32 = vector.broadcast %c-1_i32_19 : i32 to vector<1x256xi32>
    %33 = arith.addi %3, %32 : vector<1x256xi32>
    %c0_i32_20 = arith.constant 0 : i32
    %34 = vector.broadcast %c0_i32_20 : i32 to vector<1x256xi32>
    %35 = arith.cmpi sge, %33, %34 : vector<1x256xi32>
    %36 = arith.andi %31, %35 : vector<1x256xi1>
    %c-1_i32_21 = arith.constant -1 : i32
    %37 = vector.broadcast %c-1_i32_21 : i32 to vector<1x256xi32>
    %38 = arith.addi %3, %37 : vector<1x256xi32>
    %c15_i32_22 = arith.constant 15 : i32
    %39 = vector.broadcast %c15_i32_22 : i32 to vector<1x256xi32>
    %40 = arith.cmpi sle, %38, %39 : vector<1x256xi32>
    %41 = arith.andi %36, %40 : vector<1x256xi1>
    %c17_i32 = arith.constant 17 : i32
    %42 = tpu.dynamic_rotate %22 by %c17_i32 dim 1 : vector<16x256xf32>, i32 -> vector<16x256xf32>
    %cst_23 = arith.constant 0.000000e+00 : f32
    %43 = vector.shape_cast %41 : vector<1x256xi1> to vector<1x256xi1>
    %44 = vector.broadcast %43 : vector<1x256xi1> to vector<16x256xi1>
    %45 = vector.broadcast %cst_23 : f32 to vector<16x256xf32>
    %46 = arith.select %44, %42, %45 : vector<16x256xi1>, vector<16x256xf32>
    %c0_i32_24 = arith.constant 0 : i32
    %47 = vector.broadcast %c0_i32_24 : i32 to vector<1x256xi32>
    %48 = arith.addi %3, %47 : vector<1x256xi32>
    %c0_i32_25 = arith.constant 0 : i32
    %49 = vector.broadcast %c0_i32_25 : i32 to vector<1x256xi32>
    %50 = arith.cmpi sge, %48, %49 : vector<1x256xi32>
    %51 = arith.andi %31, %50 : vector<1x256xi1>
    %c0_i32_26 = arith.constant 0 : i32
    %52 = vector.broadcast %c0_i32_26 : i32 to vector<1x256xi32>
    %53 = arith.addi %3, %52 : vector<1x256xi32>
    %c15_i32_27 = arith.constant 15 : i32
    %54 = vector.broadcast %c15_i32_27 : i32 to vector<1x256xi32>
    %55 = arith.cmpi sle, %53, %54 : vector<1x256xi32>
    %56 = arith.andi %51, %55 : vector<1x256xi1>
    %c16_i32 = arith.constant 16 : i32
    %57 = tpu.dynamic_rotate %22 by %c16_i32 dim 1 : vector<16x256xf32>, i32 -> vector<16x256xf32>
    %cst_28 = arith.constant 0.000000e+00 : f32
    %58 = vector.shape_cast %56 : vector<1x256xi1> to vector<1x256xi1>
    %59 = vector.broadcast %58 : vector<1x256xi1> to vector<16x256xi1>
    %60 = vector.broadcast %cst_28 : f32 to vector<16x256xf32>
    %61 = arith.select %59, %57, %60 : vector<16x256xi1>, vector<16x256xf32>
    %c1_i32 = arith.constant 1 : i32
    %62 = vector.broadcast %c1_i32 : i32 to vector<1x256xi32>
    %63 = arith.addi %3, %62 : vector<1x256xi32>
    %c0_i32_29 = arith.constant 0 : i32
    %64 = vector.broadcast %c0_i32_29 : i32 to vector<1x256xi32>
    %65 = arith.cmpi sge, %63, %64 : vector<1x256xi32>
    %66 = arith.andi %31, %65 : vector<1x256xi1>
    %c1_i32_30 = arith.constant 1 : i32
    %67 = vector.broadcast %c1_i32_30 : i32 to vector<1x256xi32>
    %68 = arith.addi %3, %67 : vector<1x256xi32>
    %c15_i32_31 = arith.constant 15 : i32
    %69 = vector.broadcast %c15_i32_31 : i32 to vector<1x256xi32>
    %70 = arith.cmpi sle, %68, %69 : vector<1x256xi32>
    %71 = arith.andi %66, %70 : vector<1x256xi1>
    %c15_i32_32 = arith.constant 15 : i32
    %72 = tpu.dynamic_rotate %22 by %c15_i32_32 dim 1 : vector<16x256xf32>, i32 -> vector<16x256xf32>
    %cst_33 = arith.constant 0.000000e+00 : f32
    %73 = vector.shape_cast %71 : vector<1x256xi1> to vector<1x256xi1>
    %74 = vector.broadcast %73 : vector<1x256xi1> to vector<16x256xi1>
    %75 = vector.broadcast %cst_33 : f32 to vector<16x256xf32>
    %76 = arith.select %74, %72, %75 : vector<16x256xi1>, vector<16x256xf32>
    %c0_i32_34 = arith.constant 0 : i32
    %77 = vector.broadcast %c0_i32_34 : i32 to vector<1x256xi32>
    %78 = arith.addi %2, %77 : vector<1x256xi32>
    %c0_i32_35 = arith.constant 0 : i32
    %79 = vector.broadcast %c0_i32_35 : i32 to vector<1x256xi32>
    %80 = arith.cmpi sge, %78, %79 : vector<1x256xi32>
    %c0_i32_36 = arith.constant 0 : i32
    %81 = vector.broadcast %c0_i32_36 : i32 to vector<1x256xi32>
    %82 = arith.addi %2, %81 : vector<1x256xi32>
    %c15_i32_37 = arith.constant 15 : i32
    %83 = vector.broadcast %c15_i32_37 : i32 to vector<1x256xi32>
    %84 = arith.cmpi sle, %82, %83 : vector<1x256xi32>
    %85 = arith.andi %80, %84 : vector<1x256xi1>
    %c-1_i32_38 = arith.constant -1 : i32
    %86 = vector.broadcast %c-1_i32_38 : i32 to vector<1x256xi32>
    %87 = arith.addi %3, %86 : vector<1x256xi32>
    %c0_i32_39 = arith.constant 0 : i32
    %88 = vector.broadcast %c0_i32_39 : i32 to vector<1x256xi32>
    %89 = arith.cmpi sge, %87, %88 : vector<1x256xi32>
    %90 = arith.andi %85, %89 : vector<1x256xi1>
    %c-1_i32_40 = arith.constant -1 : i32
    %91 = vector.broadcast %c-1_i32_40 : i32 to vector<1x256xi32>
    %92 = arith.addi %3, %91 : vector<1x256xi32>
    %c15_i32_41 = arith.constant 15 : i32
    %93 = vector.broadcast %c15_i32_41 : i32 to vector<1x256xi32>
    %94 = arith.cmpi sle, %92, %93 : vector<1x256xi32>
    %95 = arith.andi %90, %94 : vector<1x256xi1>
    %c1_i32_42 = arith.constant 1 : i32
    %96 = tpu.dynamic_rotate %22 by %c1_i32_42 dim 1 : vector<16x256xf32>, i32 -> vector<16x256xf32>
    %cst_43 = arith.constant 0.000000e+00 : f32
    %97 = vector.shape_cast %95 : vector<1x256xi1> to vector<1x256xi1>
    %98 = vector.broadcast %97 : vector<1x256xi1> to vector<16x256xi1>
    %99 = vector.broadcast %cst_43 : f32 to vector<16x256xf32>
    %100 = arith.select %98, %96, %99 : vector<16x256xi1>, vector<16x256xf32>
    %c0_i32_44 = arith.constant 0 : i32
    %101 = vector.broadcast %c0_i32_44 : i32 to vector<1x256xi32>
    %102 = arith.addi %3, %101 : vector<1x256xi32>
    %c0_i32_45 = arith.constant 0 : i32
    %103 = vector.broadcast %c0_i32_45 : i32 to vector<1x256xi32>
    %104 = arith.cmpi sge, %102, %103 : vector<1x256xi32>
    %105 = arith.andi %85, %104 : vector<1x256xi1>
    %c0_i32_46 = arith.constant 0 : i32
    %106 = vector.broadcast %c0_i32_46 : i32 to vector<1x256xi32>
    %107 = arith.addi %3, %106 : vector<1x256xi32>
    %c15_i32_47 = arith.constant 15 : i32
    %108 = vector.broadcast %c15_i32_47 : i32 to vector<1x256xi32>
    %109 = arith.cmpi sle, %107, %108 : vector<1x256xi32>
    %110 = arith.andi %105, %109 : vector<1x256xi1>
    %cst_48 = arith.constant 0.000000e+00 : f32
    %111 = vector.shape_cast %110 : vector<1x256xi1> to vector<1x256xi1>
    %112 = vector.broadcast %111 : vector<1x256xi1> to vector<16x256xi1>
    %113 = vector.broadcast %cst_48 : f32 to vector<16x256xf32>
    %114 = arith.select %112, %22, %113 : vector<16x256xi1>, vector<16x256xf32>
    %c1_i32_49 = arith.constant 1 : i32
    %115 = vector.broadcast %c1_i32_49 : i32 to vector<1x256xi32>
    %116 = arith.addi %3, %115 : vector<1x256xi32>
    %c0_i32_50 = arith.constant 0 : i32
    %117 = vector.broadcast %c0_i32_50 : i32 to vector<1x256xi32>
    %118 = arith.cmpi sge, %116, %117 : vector<1x256xi32>
    %119 = arith.andi %85, %118 : vector<1x256xi1>
    %c1_i32_51 = arith.constant 1 : i32
    %120 = vector.broadcast %c1_i32_51 : i32 to vector<1x256xi32>
    %121 = arith.addi %3, %120 : vector<1x256xi32>
    %c15_i32_52 = arith.constant 15 : i32
    %122 = vector.broadcast %c15_i32_52 : i32 to vector<1x256xi32>
    %123 = arith.cmpi sle, %121, %122 : vector<1x256xi32>
    %124 = arith.andi %119, %123 : vector<1x256xi1>
    %c255_i32 = arith.constant 255 : i32
    %125 = tpu.dynamic_rotate %22 by %c255_i32 dim 1 : vector<16x256xf32>, i32 -> vector<16x256xf32>
    %cst_53 = arith.constant 0.000000e+00 : f32
    %126 = vector.shape_cast %124 : vector<1x256xi1> to vector<1x256xi1>
    %127 = vector.broadcast %126 : vector<1x256xi1> to vector<16x256xi1>
    %128 = vector.broadcast %cst_53 : f32 to vector<16x256xf32>
    %129 = arith.select %127, %125, %128 : vector<16x256xi1>, vector<16x256xf32>
    %c1_i32_54 = arith.constant 1 : i32
    %130 = vector.broadcast %c1_i32_54 : i32 to vector<1x256xi32>
    %131 = arith.addi %2, %130 : vector<1x256xi32>
    %c0_i32_55 = arith.constant 0 : i32
    %132 = vector.broadcast %c0_i32_55 : i32 to vector<1x256xi32>
    %133 = arith.cmpi sge, %131, %132 : vector<1x256xi32>
    %c1_i32_56 = arith.constant 1 : i32
    %134 = vector.broadcast %c1_i32_56 : i32 to vector<1x256xi32>
    %135 = arith.addi %2, %134 : vector<1x256xi32>
    %c15_i32_57 = arith.constant 15 : i32
    %136 = vector.broadcast %c15_i32_57 : i32 to vector<1x256xi32>
    %137 = arith.cmpi sle, %135, %136 : vector<1x256xi32>
    %138 = arith.andi %133, %137 : vector<1x256xi1>
    %c-1_i32_58 = arith.constant -1 : i32
    %139 = vector.broadcast %c-1_i32_58 : i32 to vector<1x256xi32>
    %140 = arith.addi %3, %139 : vector<1x256xi32>
    %c0_i32_59 = arith.constant 0 : i32
    %141 = vector.broadcast %c0_i32_59 : i32 to vector<1x256xi32>
    %142 = arith.cmpi sge, %140, %141 : vector<1x256xi32>
    %143 = arith.andi %138, %142 : vector<1x256xi1>
    %c-1_i32_60 = arith.constant -1 : i32
    %144 = vector.broadcast %c-1_i32_60 : i32 to vector<1x256xi32>
    %145 = arith.addi %3, %144 : vector<1x256xi32>
    %c15_i32_61 = arith.constant 15 : i32
    %146 = vector.broadcast %c15_i32_61 : i32 to vector<1x256xi32>
    %147 = arith.cmpi sle, %145, %146 : vector<1x256xi32>
    %148 = arith.andi %143, %147 : vector<1x256xi1>
    %c241_i32 = arith.constant 241 : i32
    %149 = tpu.dynamic_rotate %22 by %c241_i32 dim 1 : vector<16x256xf32>, i32 -> vector<16x256xf32>
    %cst_62 = arith.constant 0.000000e+00 : f32
    %150 = vector.shape_cast %148 : vector<1x256xi1> to vector<1x256xi1>
    %151 = vector.broadcast %150 : vector<1x256xi1> to vector<16x256xi1>
    %152 = vector.broadcast %cst_62 : f32 to vector<16x256xf32>
    %153 = arith.select %151, %149, %152 : vector<16x256xi1>, vector<16x256xf32>
    %c0_i32_63 = arith.constant 0 : i32
    %154 = vector.broadcast %c0_i32_63 : i32 to vector<1x256xi32>
    %155 = arith.addi %3, %154 : vector<1x256xi32>
    %c0_i32_64 = arith.constant 0 : i32
    %156 = vector.broadcast %c0_i32_64 : i32 to vector<1x256xi32>
    %157 = arith.cmpi sge, %155, %156 : vector<1x256xi32>
    %158 = arith.andi %138, %157 : vector<1x256xi1>
    %c0_i32_65 = arith.constant 0 : i32
    %159 = vector.broadcast %c0_i32_65 : i32 to vector<1x256xi32>
    %160 = arith.addi %3, %159 : vector<1x256xi32>
    %c15_i32_66 = arith.constant 15 : i32
    %161 = vector.broadcast %c15_i32_66 : i32 to vector<1x256xi32>
    %162 = arith.cmpi sle, %160, %161 : vector<1x256xi32>
    %163 = arith.andi %158, %162 : vector<1x256xi1>
    %c240_i32 = arith.constant 240 : i32
    %164 = tpu.dynamic_rotate %22 by %c240_i32 dim 1 : vector<16x256xf32>, i32 -> vector<16x256xf32>
    %cst_67 = arith.constant 0.000000e+00 : f32
    %165 = vector.shape_cast %163 : vector<1x256xi1> to vector<1x256xi1>
    %166 = vector.broadcast %165 : vector<1x256xi1> to vector<16x256xi1>
    %167 = vector.broadcast %cst_67 : f32 to vector<16x256xf32>
    %168 = arith.select %166, %164, %167 : vector<16x256xi1>, vector<16x256xf32>
    %c1_i32_68 = arith.constant 1 : i32
    %169 = vector.broadcast %c1_i32_68 : i32 to vector<1x256xi32>
    %170 = arith.addi %3, %169 : vector<1x256xi32>
    %c0_i32_69 = arith.constant 0 : i32
    %171 = vector.broadcast %c0_i32_69 : i32 to vector<1x256xi32>
    %172 = arith.cmpi sge, %170, %171 : vector<1x256xi32>
    %173 = arith.andi %138, %172 : vector<1x256xi1>
    %c1_i32_70 = arith.constant 1 : i32
    %174 = vector.broadcast %c1_i32_70 : i32 to vector<1x256xi32>
    %175 = arith.addi %3, %174 : vector<1x256xi32>
    %c15_i32_71 = arith.constant 15 : i32
    %176 = vector.broadcast %c15_i32_71 : i32 to vector<1x256xi32>
    %177 = arith.cmpi sle, %175, %176 : vector<1x256xi32>
    %178 = arith.andi %173, %177 : vector<1x256xi1>
    %c239_i32 = arith.constant 239 : i32
    %179 = tpu.dynamic_rotate %22 by %c239_i32 dim 1 : vector<16x256xf32>, i32 -> vector<16x256xf32>
    %cst_72 = arith.constant 0.000000e+00 : f32
    %180 = vector.shape_cast %178 : vector<1x256xi1> to vector<1x256xi1>
    %181 = vector.broadcast %180 : vector<1x256xi1> to vector<16x256xi1>
    %182 = vector.broadcast %cst_72 : f32 to vector<16x256xf32>
    %183 = arith.select %181, %179, %182 : vector<16x256xi1>, vector<16x256xf32>
    %184 = tpu.concatenate %46, %61, %76, %100, %114, %129, %153, %168, %183 in 0 : vector<16x256xf32>, vector<16x256xf32>, vector<16x256xf32>, vector<16x256xf32>, vector<16x256xf32>, vector<16x256xf32>, vector<16x256xf32>, vector<16x256xf32>, vector<16x256xf32> -> vector<144x256xf32>
    %185 = arith.truncf %184 : vector<144x256xf32> to vector<144x256xbf16>
    %c0_73 = arith.constant 0 : index
    %c0_74 = arith.constant 0 : index
    %186 = vector.load %arg9[%c0_73, %c0_74] : memref<8x144xbf16, #tpu.memory_space<vmem>>, vector<8x144xbf16>
    %cst_75 = arith.constant dense<0.000000e+00> : vector<8x256xf32>
    %187 = tpu.matmul %186, %185, %cst_75 {dimension_numbers = #tpu.dot_dimension_numbers<[1], [0], [0], [1], [0, 0, 1, 1], [], []>} : vector<8x144xbf16>, vector<144x256xbf16>, vector<8x256xf32> -> vector<8x256xf32>
    %c0_76 = arith.constant 0 : index
    %c0_77 = arith.constant 0 : index
    %c0_78 = arith.constant 0 : index
    %188 = vector.load %arg10[%c0_76, %c0_77, %c0_78] : memref<1x12x256xf32, #tpu.memory_space<vmem>>, vector<1x8x256xf32>
    %189 = vector.shape_cast %188 : vector<1x8x256xf32> to vector<8x256xf32>
    %190 = vector.shape_cast %187 : vector<8x256xf32> to vector<1x8x256xf32>
    tpu.vector_store %arg10[%c0_76, %c0_77, %c0_78], %190 {strides = array<i32>} : memref<1x12x256xf32, #tpu.memory_space<vmem>>, vector<1x8x256xf32>,
    %c0_79 = arith.constant 0 : index
    %c8 = arith.constant 8 : index
    %c0_80 = arith.constant 0 : index
    %191 = vector.load %arg10[%c0_79, %c8, %c0_80] : memref<1x12x256xf32, #tpu.memory_space<vmem>>, vector<1x4x256xf32>
    %192 = vector.shape_cast %191 : vector<1x4x256xf32> to vector<4x256xf32>
    %193 = vector.shape_cast %1 : vector<4x256xf32> to vector<1x4x256xf32>
    tpu.vector_store %arg10[%c0_79, %c8, %c0_80], %193 {strides = array<i32>} : memref<1x12x256xf32, #tpu.memory_space<vmem>>, vector<1x4x256xf32>,
    return
  }
  func.func @transform_0(%arg0: i32) -> (i32, i32, i32) {
    %c0_i32 = arith.constant 0 : i32
    %c0_i32_0 = arith.constant 0 : i32
    %c0_i32_1 = arith.constant 0 : i32
    return %arg0, %c0_i32, %c0_i32_0 : i32, i32, i32
  }
  func.func @transform_1(%arg0: i32) -> (i32, i32) {
    %c0_i32 = arith.constant 0 : i32
    %c0_i32_0 = arith.constant 0 : i32
    %c0_i32_1 = arith.constant 0 : i32
    return %c0_i32, %c0_i32_0 : i32, i32
  }
  func.func @transform_2(%arg0: i32) -> (i32, i32) {
    %c0_i32 = arith.constant 0 : i32
    %c0_i32_0 = arith.constant 0 : i32
    %c0_i32_1 = arith.constant 0 : i32
    return %c0_i32, %c0_i32_0 : i32, i32
  }
  func.func @transform_3(%arg0: i32) -> (i32, i32) {
    %c0_i32 = arith.constant 0 : i32
    %c0_i32_0 = arith.constant 0 : i32
    %c0_i32_1 = arith.constant 0 : i32
    return %c0_i32, %c0_i32_0 : i32, i32
  }
  func.func @transform_4(%arg0: i32) -> (i32, i32) {
    %c0_i32 = arith.constant 0 : i32
    %c0_i32_0 = arith.constant 0 : i32
    %c0_i32_1 = arith.constant 0 : i32
    return %c0_i32, %c0_i32_0 : i32, i32
  }
  func.func @transform_5(%arg0: i32) -> (i32, i32) {
    %c0_i32 = arith.constant 0 : i32
    %c0_i32_0 = arith.constant 0 : i32
    %c0_i32_1 = arith.constant 0 : i32
    return %c0_i32, %c0_i32_0 : i32, i32
  }
  func.func @transform_6(%arg0: i32) -> (i32, i32) {
    %c0_i32 = arith.constant 0 : i32
    %c0_i32_0 = arith.constant 0 : i32
    %c0_i32_1 = arith.constant 0 : i32
    return %c0_i32, %c0_i32_0 : i32, i32
  }
  func.func @transform_7(%arg0: i32) -> (i32, i32) {
    %c0_i32 = arith.constant 0 : i32
    %c0_i32_0 = arith.constant 0 : i32
    %c0_i32_1 = arith.constant 0 : i32
    return %c0_i32, %c0_i32_0 : i32, i32
  }
  func.func @transform_8(%arg0: i32) -> (i32, i32) {
    %c0_i32 = arith.constant 0 : i32
    %c0_i32_0 = arith.constant 0 : i32
    %c0_i32_1 = arith.constant 0 : i32
    return %c0_i32, %c0_i32_0 : i32, i32
  }
  func.func @transform_9(%arg0: i32) -> (i32, i32, i32) {
    %c0_i32 = arith.constant 0 : i32
    %c0_i32_0 = arith.constant 0 : i32
    %c0_i32_1 = arith.constant 0 : i32
    return %arg0, %c0_i32, %c0_i32_0 : i32, i32, i32
  }
}

</mosaic_0001>

<llo_original>
// kernel: dense_layer_forward.1
$region0: #{dense_layer_forward.1}
  #allocation0 [shape = 'u32[]', space=smem, size = 0x4, offset = 0x4, fixed_abs, tag = 'smem constant byte address 0x4 - core index']
  #allocation1 [shape = 'u32[72,128]{1,0:T(1,128)}', space=vmem, size = 0x9000, scoped, tag = 'internal scratch']
  %s0 = inlined_call_operand.vmem [shape: f32[2,4,256], index: 0, kind: input, shape index: {}]
  %s1 = inlined_call_operand.vmem [shape: s32[1,256], index: 1, kind: input, shape index: {}]
  %s2 = inlined_call_operand.vmem [shape: s32[1,256], index: 2, kind: input, shape index: {}]
  %s3 = inlined_call_operand.vmem [shape: f32[4,1], index: 3, kind: input, shape index: {}]
  %s4 = inlined_call_operand.vmem [shape: f32[4,1], index: 4, kind: input, shape index: {}]
  %s5 = inlined_call_operand.vmem [shape: bf16[16,4], index: 5, kind: input, shape index: {}]
  %s6 = inlined_call_operand.vmem [shape: f32[16,1], index: 6, kind: input, shape index: {}]
  %s7 = inlined_call_operand.vmem [shape: f32[16,1], index: 7, kind: input, shape index: {}]
  %s8 = inlined_call_operand.vmem [shape: bf16[8,144], index: 8, kind: input, shape index: {}]
  %s9 = inlined_call_operand.vmem [shape: f32[2,12,256], index: 9, kind: output, shape index: {}]
  %s10 = sld [smem:[#allocation0]]
  $region69: #{dense_layer_forward.1} parent=0
    _
  %s12 = ssub.s32 1, %s10
  %s13 = scalar_select 0, %s12, %s10
  loop: start=0, step=1, limit=4
  $region2: #{dense_layer_forward.1} parent=0 // loop_pre_header
    _
  $region3: #{dense_layer_forward.1} parent=0 // loop_header
    %s15 = sphi 0, %s19
    %p16 = scmp.ge.s32.totalorder %s15, 4
    %s25 = sphi 0, %s27
    %s28 = sphi 0, %s25
    %s29 = sphi 0, %s28
    %s45 = sphi 0, %s29
    %s49 = sphi 0, %s49
    %s51 = sphi 0, %s49
    %s52 = sphi 0, %s51
    %s66 = sphi 0, %s52
    %s70 = sphi 0, %s70
    %s72 = sphi 0, %s70
    %s73 = sphi 0, %s72
    %s87 = sphi 0, %s73
    %s91 = sphi 0, %s91
    %s93 = sphi 0, %s91
    %s94 = sphi 0, %s93
    %s108 = sphi 0, %s94
    %s112 = sphi 0, %s112
    %s114 = sphi 0, %s112
    %s115 = sphi 0, %s114
    %s129 = sphi 0, %s115
    %s133 = sphi 0, %s133
    %s135 = sphi 0, %s133
    %s136 = sphi 0, %s135
    %s150 = sphi 0, %s136
    %s154 = sphi 0, %s154
    %s156 = sphi 0, %s154
    %s157 = sphi 0, %s156
    %s171 = sphi 0, %s157
    %s175 = sphi 0, %s175
    %s177 = sphi 0, %s175
    %s178 = sphi 0, %s177
    %s192 = sphi 0, %s178
    %s196 = sphi 0, %s196
    %s198 = sphi 0, %s196
    %s199 = sphi 0, %s198
    %s213 = sphi 0, %s199
    %s219 = sphi 0, %s221
    %s222 = sphi 0, %s219
    %s223 = sphi 0, %s222
    %s239 = sphi 0, %s223
  $region4: #{dense_layer_forward.1} parent=0 // loop_header_branch
    %18 = sbr.rel (%p16) target = $region8
  $region5: #{dense_layer_forward.1} parent=0 // loop_body
    %s20 = ssub.s32 %s15, 1
    %s21 = ssub.s32 %s15, 2
    %s22 = sadd.s32 %s15, 1
    %s23 = ssub.s32 %s15, %s22
    %p24 = scmp.eq.s32.totalorder %s23, 0
    %s26 = sadd.s32 %s25, 1
    %s27 = scalar_select %p24, %s25, %s26
    %p30 = pneg %p24
    %p31 = scmp.eq.s32.totalorder %s15, 1
    %p32 = por %p30, %p31
    %p33 = scmp.ne.s32.totalorder %s25, %s28
    %p34 = scmp.eq.s32.totalorder %s15, 0
    %p35 = por %p33, %p34
    %p36 = scmp.ne.s32.totalorder %s25, %s28
    %p37 = scmp.eq.s32.totalorder %s20, 1
    %p38 = por %p36, %p37
    %p39 = scmp.ne.s32.totalorder %s28, %s29
    %p40 = scmp.eq.s32.totalorder %s20, 0
    %p41 = por %p39, %p40
    %p42 = scmp.ne.s32.totalorder %s28, %s29
    %p43 = scmp.eq.s32.totalorder %s21, 1
    %p44 = por %p42, %p43
    %p46 = scmp.ne.s32.totalorder %s29, %s45
    %p47 = scmp.eq.s32.totalorder %s21, 0
    %p48 = por %p46, %p47
    %s50 = sadd.s32 %s49, 1
    %p53 = scmp.eq.s32.totalorder %s15, 1
    %p54 = scmp.ne.s32.totalorder %s49, %s51
    %p55 = scmp.eq.s32.totalorder %s15, 0
    %p56 = por %p54, %p55
    %p57 = scmp.ne.s32.totalorder %s49, %s51
    %p58 = scmp.eq.s32.totalorder %s20, 1
    %p59 = por %p57, %p58
    %p60 = scmp.ne.s32.totalorder %s51, %s52
    %p61 = scmp.eq.s32.totalorder %s20, 0
    %p62 = por %p60, %p61
    %p63 = scmp.ne.s32.totalorder %s51, %s52
    %p64 = scmp.eq.s32.totalorder %s21, 1
    %p65 = por %p63, %p64
    %p67 = scmp.ne.s32.totalorder %s52, %s66
    %p68 = scmp.eq.s32.totalorder %s21, 0
    %p69 = por %p67, %p68
    %s71 = sadd.s32 %s70, 1
    %p74 = scmp.eq.s32.totalorder %s15, 1
    %p75 = scmp.ne.s32.totalorder %s70, %s72
    %p76 = scmp.eq.s32.totalorder %s15, 0
    %p77 = por %p75, %p76
    %p78 = scmp.ne.s32.totalorder %s70, %s72
    %p79 = scmp.eq.s32.totalorder %s20, 1
    %p80 = por %p78, %p79
    %p81 = scmp.ne.s32.totalorder %s72, %s73
    %p82 = scmp.eq.s32.totalorder %s20, 0
    %p83 = por %p81, %p82
    %p84 = scmp.ne.s32.totalorder %s72, %s73
    %p85 = scmp.eq.s32.totalorder %s21, 1
    %p86 = por %p84, %p85
    %p88 = scmp.ne.s32.totalorder %s73, %s87
    %p89 = scmp.eq.s32.totalorder %s21, 0
    %p90 = por %p88, %p89
    %s92 = sadd.s32 %s91, 1
    %p95 = scmp.eq.s32.totalorder %s15, 1
    %p96 = scmp.ne.s32.totalorder %s91, %s93
    %p97 = scmp.eq.s32.totalorder %s15, 0
    %p98 = por %p96, %p97
    %p99 = scmp.ne.s32.totalorder %s91, %s93
    %p100 = scmp.eq.s32.totalorder %s20, 1
    %p101 = por %p99, %p100
    %p102 = scmp.ne.s32.totalorder %s93, %s94
    %p103 = scmp.eq.s32.totalorder %s20, 0
    %p104 = por %p102, %p103
    %p105 = scmp.ne.s32.totalorder %s93, %s94
    %p106 = scmp.eq.s32.totalorder %s21, 1
    %p107 = por %p105, %p106
    %p109 = scmp.ne.s32.totalorder %s94, %s108
    %p110 = scmp.eq.s32.totalorder %s21, 0
    %p111 = por %p109, %p110
    %s113 = sadd.s32 %s112, 1
    %p116 = scmp.eq.s32.totalorder %s15, 1
    %p117 = scmp.ne.s32.totalorder %s112, %s114
    %p118 = scmp.eq.s32.totalorder %s15, 0
    %p119 = por %p117, %p118
    %p120 = scmp.ne.s32.totalorder %s112, %s114
    %p121 = scmp.eq.s32.totalorder %s20, 1
    %p122 = por %p120, %p121
    %p123 = scmp.ne.s32.totalorder %s114, %s115
    %p124 = scmp.eq.s32.totalorder %s20, 0
    %p125 = por %p123, %p124
    %p126 = scmp.ne.s32.totalorder %s114, %s115
    %p127 = scmp.eq.s32.totalorder %s21, 1
    %p128 = por %p126, %p127
    %p130 = scmp.ne.s32.totalorder %s115, %s129
    %p131 = scmp.eq.s32.totalorder %s21, 0
    %p132 = por %p130, %p131
    %s134 = sadd.s32 %s133, 1
    %p137 = scmp.eq.s32.totalorder %s15, 1
    %p138 = scmp.ne.s32.totalorder %s133, %s135
    %p139 = scmp.eq.s32.totalorder %s15, 0
    %p140 = por %p138, %p139
    %p141 = scmp.ne.s32.totalorder %s133, %s135
    %p142 = scmp.eq.s32.totalorder %s20, 1
    %p143 = por %p141, %p142
    %p144 = scmp.ne.s32.totalorder %s135, %s136
    %p145 = scmp.eq.s32.totalorder %s20, 0
    %p146 = por %p144, %p145
    %p147 = scmp.ne.s32.totalorder %s135, %s136
    %p148 = scmp.eq.s32.totalorder %s21, 1
    %p149 = por %p147, %p148
    %p151 = scmp.ne.s32.totalorder %s136, %s150
    %p152 = scmp.eq.s32.totalorder %s21, 0
    %p153 = por %p151, %p152
    %s155 = sadd.s32 %s154, 1
    %p158 = scmp.eq.s32.totalorder %s15, 1
    %p159 = scmp.ne.s32.totalorder %s154, %s156
    %p160 = scmp.eq.s32.totalorder %s15, 0
    %p161 = por %p159, %p160
    %p162 = scmp.ne.s32.totalorder %s154, %s156
    %p163 = scmp.eq.s32.totalorder %s20, 1
    %p164 = por %p162, %p163
    %p165 = scmp.ne.s32.totalorder %s156, %s157
    %p166 = scmp.eq.s32.totalorder %s20, 0
    %p167 = por %p165, %p166
    %p168 = scmp.ne.s32.totalorder %s156, %s157
    %p169 = scmp.eq.s32.totalorder %s21, 1
    %p170 = por %p168, %p169
    %p172 = scmp.ne.s32.totalorder %s157, %s171
    %p173 = scmp.eq.s32.totalorder %s21, 0
    %p174 = por %p172, %p173
    %s176 = sadd.s32 %s175, 1
    %p179 = scmp.eq.s32.totalorder %s15, 1
    %p180 = scmp.ne.s32.totalorder %s175, %s177
    %p181 = scmp.eq.s32.totalorder %s15, 0
    %p182 = por %p180, %p181
    %p183 = scmp.ne.s32.totalorder %s175, %s177
    %p184 = scmp.eq.s32.totalorder %s20, 1
    %p185 = por %p183, %p184
    %p186 = scmp.ne.s32.totalorder %s177, %s178
    %p187 = scmp.eq.s32.totalorder %s20, 0
    %p188 = por %p186, %p187
    %p189 = scmp.ne.s32.totalorder %s177, %s178
    %p190 = scmp.eq.s32.totalorder %s21, 1
    %p191 = por %p189, %p190
    %p193 = scmp.ne.s32.totalorder %s178, %s192
    %p194 = scmp.eq.s32.totalorder %s21, 0
    %p195 = por %p193, %p194
    %s197 = sadd.s32 %s196, 1
    %p200 = scmp.eq.s32.totalorder %s15, 1
    %p201 = scmp.ne.s32.totalorder %s196, %s198
    %p202 = scmp.eq.s32.totalorder %s15, 0
    %p203 = por %p201, %p202
    %p204 = scmp.ne.s32.totalorder %s196, %s198
    %p205 = scmp.eq.s32.totalorder %s20, 1
    %p206 = por %p204, %p205
    %p207 = scmp.ne.s32.totalorder %s198, %s199
    %p208 = scmp.eq.s32.totalorder %s20, 0
    %p209 = por %p207, %p208
    %p210 = scmp.ne.s32.totalorder %s198, %s199
    %p211 = scmp.eq.s32.totalorder %s21, 1
    %p212 = por %p210, %p211
    %p214 = scmp.ne.s32.totalorder %s199, %s213
    %p215 = scmp.eq.s32.totalorder %s21, 0
    %p216 = por %p214, %p215
    %s217 = ssub.s32 %s15, %s22
    %p218 = scmp.eq.s32.totalorder %s217, 0
    %s220 = sadd.s32 %s219, 1
    %s221 = scalar_select %p218, %s219, %s220
    %p224 = pneg %p218
    %p225 = scmp.eq.s32.totalorder %s15, 1
    %p226 = por %p224, %p225
    %p227 = scmp.ne.s32.totalorder %s219, %s222
    %p228 = scmp.eq.s32.totalorder %s15, 0
    %p229 = por %p227, %p228
    %p230 = scmp.ne.s32.totalorder %s219, %s222
    %p231 = scmp.eq.s32.totalorder %s20, 1
    %p232 = por %p230, %p231
    %p233 = scmp.ne.s32.totalorder %s222, %s223
    %p234 = scmp.eq.s32.totalorder %s20, 0
    %p235 = por %p233, %p234
    %p236 = scmp.ne.s32.totalorder %s222, %s223
    %p237 = scmp.eq.s32.totalorder %s21, 1
    %p238 = por %p236, %p237
    %p240 = scmp.ne.s32.totalorder %s223, %s239
    %p241 = scmp.eq.s32.totalorder %s21, 0
    %p242 = por %p240, %p241
    %p243 = scmp.le.s32.totalorder 1, %s15
    %p244 = scmp.lt.s32.totalorder %s15, 3
    %p245 = pnand %p243, %p244
    %p246 = pneg %p245
    // Predicated region
    $region9: #{dense_layer_forward.1} parent=5 // pred_check
      _
    $region10: #{dense_layer_forward.1} parent=5 // pred_check_branch
      %248 = sbr.rel (%p245) target = $region12
    $region11: #{dense_layer_forward.1} parent=5 // pred_region
      %s249 = ssub.s32 %s15, 1
      // Predicated region
      $region13: #{dense_layer_forward.1} parent=11 // pred_check
        %p250 = pneg %p62
      $region14: #{dense_layer_forward.1} parent=11 // pred_check_branch
        %252 = sbr.rel (%p250) target = $region16
      $region15: #{dense_layer_forward.1} parent=11 // pred_region
        _
      $region16: #{dense_layer_forward.1} parent=11 // pred_fallthru
        _
      // Predicated region
      $region17: #{dense_layer_forward.1} parent=11 // pred_check
        %p253 = pneg %p83
      $region18: #{dense_layer_forward.1} parent=11 // pred_check_branch
        %255 = sbr.rel (%p253) target = $region20
      $region19: #{dense_layer_forward.1} parent=11 // pred_region
        _
      $region20: #{dense_layer_forward.1} parent=11 // pred_fallthru
        _
      // Predicated region
      $region21: #{dense_layer_forward.1} parent=11 // pred_check
        %p256 = pneg %p104
      $region22: #{dense_layer_forward.1} parent=11 // pred_check_branch
        %258 = sbr.rel (%p256) target = $region24
      $region23: #{dense_layer_forward.1} parent=11 // pred_region
        _
      $region24: #{dense_layer_forward.1} parent=11 // pred_fallthru
        _
      // Predicated region
      $region25: #{dense_layer_forward.1} parent=11 // pred_check
        %p259 = pneg %p125
      $region26: #{dense_layer_forward.1} parent=11 // pred_check_branch
        %261 = sbr.rel (%p259) target = $region28
      $region27: #{dense_layer_forward.1} parent=11 // pred_region
        _
      $region28: #{dense_layer_forward.1} parent=11 // pred_fallthru
        _
      // Predicated region
      $region29: #{dense_layer_forward.1} parent=11 // pred_check
        %p262 = pneg %p146
      $region30: #{dense_layer_forward.1} parent=11 // pred_check_branch
        %264 = sbr.rel (%p262) target = $region32
      $region31: #{dense_layer_forward.1} parent=11 // pred_region
        _
      $region32: #{dense_layer_forward.1} parent=11 // pred_fallthru
        _
      // Predicated region
      $region33: #{dense_layer_forward.1} parent=11 // pred_check
        %p265 = pneg %p167
      $region34: #{dense_layer_forward.1} parent=11 // pred_check_branch
        %267 = sbr.rel (%p265) target = $region36
      $region35: #{dense_layer_forward.1} parent=11 // pred_region
        _
      $region36: #{dense_layer_forward.1} parent=11 // pred_fallthru
        _
      // Predicated region
      $region37: #{dense_layer_forward.1} parent=11 // pred_check
        %p268 = pneg %p188
      $region38: #{dense_layer_forward.1} parent=11 // pred_check_branch
        %270 = sbr.rel (%p268) target = $region40
      $region39: #{dense_layer_forward.1} parent=11 // pred_region
        _
      $region40: #{dense_layer_forward.1} parent=11 // pred_fallthru
        _
      // Predicated region
      $region41: #{dense_layer_forward.1} parent=11 // pred_check
        %p271 = pneg %p209
      $region42: #{dense_layer_forward.1} parent=11 // pred_check_branch
        %273 = sbr.rel (%p271) target = $region44
      $region43: #{dense_layer_forward.1} parent=11 // pred_region
        _
      $region44: #{dense_layer_forward.1} parent=11 // pred_fallthru
        _
    $region12: #{dense_layer_forward.1} parent=5 // pred_fallthru
      _
    %p274 = scmp.lt.s32.totalorder %s15, 2
    // Predicated region
    $region45: #{dense_layer_forward.1} parent=5 // pred_check
      %p275 = pneg %p274
    $region46: #{dense_layer_forward.1} parent=5 // pred_check_branch
      %277 = sbr.rel (%p275) target = $region48
    $region47: #{dense_layer_forward.1} parent=5 // pred_region
      // Predicated region
      $region49: #{dense_layer_forward.1} parent=47 // pred_check
        %p278 = pneg %p35
      $region50: #{dense_layer_forward.1} parent=47 // pred_check_branch
        %280 = sbr.rel (%p278) target = $region52
      $region51: #{dense_layer_forward.1} parent=47 // pred_region
        %p281 = scmp.lt.s32.totalorder %s15, 1
        %s282 = scalar_select %p281, %s15, 1
        %s283 = smul.addr %s282, 2
        %s284 = smul.addr %s283, 4
        %s285 = scalar_lea.vmem %s0, %s284
      $region52: #{dense_layer_forward.1} parent=47 // pred_fallthru
        _
    $region48: #{dense_layer_forward.1} parent=5 // pred_fallthru
      _
    %p286 = scmp.le.s32.totalorder 1, %s15
    %p287 = scmp.lt.s32.totalorder %s15, 3
    %p288 = pnand %p286, %p287
    %p289 = pneg %p288
    // Predicated region
    $region53: #{dense_layer_forward.1} parent=5 // pred_check
      _
    $region54: #{dense_layer_forward.1} parent=5 // pred_check_branch
      %291 = sbr.rel (%p288) target = $region56
    $region55: #{dense_layer_forward.1} parent=5 // pred_region
      %s292 = ssub.s32 %s15, 1
      %p293 = scmp.lt.s32.totalorder %s20, 1
      %s294 = scalar_select %p293, %s20, 1
      %s295 = smul.addr %s294, 2
      %s296 = smul.addr %s295, 4
      %s297 = scalar_lea.vmem %s0, %s296
      %p298 = pneg %p41
      %p299 = pneg %p38
      %p300 = pneg %p62
      %p301 = pneg %p59
      %p302 = pneg %p83
      %p303 = pneg %p80
      %p304 = pneg %p104
      %p305 = pneg %p101
      %p306 = pneg %p125
      %p307 = pneg %p122
      %p308 = pneg %p146
      %p309 = pneg %p143
      %p310 = pneg %p167
      %p311 = pneg %p164
      %p312 = pneg %p188
      %p313 = pneg %p185
      %p314 = pneg %p209
      %p315 = pneg %p206
      %p316 = pneg %p235
      %p317 = pneg %p232
      %p318 = scmp.lt.s32.totalorder %s20, 1
      %s319 = scalar_select %p318, %s20, 1
      %s320 = smul.addr %s319, 4
      %s321 = smul.addr %s320, 8
      %s322 = scalar_lea.vmem %s9, %s321
      %p323 = scmp.lt.s32.totalorder %s20, 1
      %s324 = scalar_select %p323, %s20, 1
      %s325 = smul.addr %s324, 2
      %s326 = smul.addr %s325, 4
      %s327 = scalar_lea.vmem %s0, %s326
      %p328 = scmp.lt.s32.totalorder %s20, 1
      %s329 = scalar_select %p328, %s20, 1
      %s330 = smul.addr %s329, 4
      %s331 = smul.addr %s330, 8
      %s332 = scalar_lea.vmem %s9, %s331
      %v334 = vld [vmem:[%s327] sm:$0xff]
      %v335 = vld [vmem:[%s1] sm:$0x3]
      %v336 = vld [vmem:[%s2] sm:$0x3]
      %v337 = vld [vmem:[%s3] sm:$0xf]
      %339 = vset.pattern.permute.xlu0 0
      %340 = vperm.xlu0 %339, %v337
      %v341 = vpop.permute.xlu0 %340
      %v343 = vunpack.c.l.s4 839922192
      %v344 = vunpack.c.0.s8 %v343
      %v345 = vperm.slane %v341, %v344
      %v347 = vmul.f32 %v334, %v345
      %v348 = vld [vmem:[%s4] sm:$0xf]
      %350 = vset.pattern.permute.xlu0 0
      %351 = vperm.xlu0 %350, %v348
      %v352 = vpop.permute.xlu0 %351
      %v354 = vunpack.c.l.s4 839922192
      %v355 = vunpack.c.0.s8 %v354
      %v356 = vperm.slane %v352, %v355
      %v358 = vadd.f32 %v347, %v356
      %v359 = vmax.f32 %v358, 0.0
      %v360 = vld [vmem:[%s5] sm:$0xf]
      %v361 = vld [vmem:[%s5 + $0x4] sm:$0xf]
      %363 = vst [vmem:[#allocation1] ss:$2 sm:$0xff] %v359
      %v364 = vld.sshfl [vmem:[#allocation1] sm:$0xff pattern:$0x75316420]
      %v365 = vld.sshfl [vmem:[#allocation1 + $0x8] sm:$0xff pattern:$0x75316420]
      %v368 = vpack.c.bf16 %v364, %v364
      %v369 = vpack.c.bf16 %v365, %v365
      %v372 = vunpack.c.l.b16 %v360
      %v373 = vunpack.c.l.b16 %v361
      %v374 = vpack.c.b16 %v373, %v372
      %vm375 = vcmask 31744
      %v377 = vsel %vm375, %v374, 0
      %vm379 = vcmask 1041408
      %v381 = vsel %vm379, %v368, 0
      %v384 = vsel %vm379, %v369, 0
      %386 = vmatpush.bf16.msra.mxu0 0
      %387 = vmatpush.bf16.msra.mxu0 0
      %388 = vmatpush.bf16.msra.mxu0 0
      %389 = vmatpush.bf16.msra.mxu0 0
      %390 = vmatpush.bf16.msra.mxu0 0
      %391 = vmatpush.bf16.msra.mxu0 0
      %392 = vmatpush.bf16.msra.mxu0 0
      %393 = vmatpush.bf16.msra.mxu0 %v381
      %394 = vmatmul.bf16.gmra.mxu0 %v377
      %v395 = vpop.f32.mrf.mxu0
      %v396 = vadd.f32 0.0, %v395
      %v397 = vpop.f32.mrf.mxu0
      %v398 = vadd.f32 0.0, %v397
      %399 = vdwg.mxu0
      %400 = vmatpush.bf16.msra.mxu0 0
      %401 = vmatpush.bf16.msra.mxu0 0
      %402 = vmatpush.bf16.msra.mxu0 0
      %403 = vmatpush.bf16.msra.mxu0 0
      %404 = vmatpush.bf16.msra.mxu0 0
      %405 = vmatpush.bf16.msra.mxu0 0
      %406 = vmatpush.bf16.msra.mxu0 0
      %407 = vmatpush.bf16.msra.mxu0 %v384
      %408 = vmatmul.bf16.gmra.mxu0 %v377
      %v409 = vpop.f32.mrf.mxu0
      %v410 = vadd.f32 0.0, %v409
      %v411 = vpop.f32.mrf.mxu0
      %v412 = vadd.f32 0.0, %v411
      %413 = vdwg.mxu0
      %v414 = vld [vmem:[%s6] sm:$0xff]
      %v415 = vld [vmem:[%s6 + $0x8] sm:$0xff]
      %417 = vset.pattern.permute.xlu0 0
      %418 = vperm.xlu0 %417, %v414
      %v419 = vpop.permute.xlu0 %418
      %422 = vset.pattern.permute.xlu0 0
      %423 = vperm.xlu0 %422, %v415
      %v424 = vpop.permute.xlu0 %423
      %v426 = vmul.f32 %v396, %v419
      %v427 = vmul.f32 %v410, %v419
      %v428 = vmul.f32 %v398, %v424
      %v429 = vmul.f32 %v412, %v424
      %v430 = vld [vmem:[%s7] sm:$0xff]
      %v431 = vld [vmem:[%s7 + $0x8] sm:$0xff]
      %433 = vset.pattern.permute.xlu0 0
      %434 = vperm.xlu0 %433, %v430
      %v435 = vpop.permute.xlu0 %434
      %438 = vset.pattern.permute.xlu0 0
      %439 = vperm.xlu0 %438, %v431
      %v440 = vpop.permute.xlu0 %439
      %v442 = vadd.f32 %v426, %v435
      %v443 = vadd.f32 %v427, %v435
      %v444 = vadd.f32 %v428, %v440
      %v445 = vadd.f32 %v429, %v440
      %v446 = vmax.f32 %v442, 0.0
      %v447 = vmax.f32 %v443, 0.0
      %v448 = vmax.f32 %v444, 0.0
      %v449 = vmax.f32 %v445, 0.0
      %v450 = vadd.s32 %v335, 4294967295
      %vm451 = vcmp.ge.s32.totalorder %v450, 0
      %vm452 = vcmp.le.s32.totalorder %v450, 15
      %vm453 = vmand %vm451, %vm452
      %v454 = vadd.s32 %v336, 4294967295
      %vm455 = vcmp.ge.s32.totalorder %v454, 0
      %vm456 = vmand %vm453, %vm455
      %vm457 = vcmp.le.s32.totalorder %v454, 15
      %vm458 = vmand %vm456, %vm457
      %459 = vrot.lane.b32.xlu0 %v446, 17
      %v460 = vpop.permute.xlu0 %459
      %461 = vrot.lane.b32.xlu0 %v448, 17
      %v462 = vpop.permute.xlu0 %461
      %463 = vrot.lane.b32.xlu0 %v447, 17
      %v464 = vpop.permute.xlu0 %463
      %465 = vrot.lane.b32.xlu0 %v449, 17
      %v466 = vpop.permute.xlu0 %465
      %v467 = vlaneseq
      %v468 = vand.u32 %v467, 127
      %vm469 = vcmp.lt.s32.totalorder %v468, 17
      %v470 = vsel %vm469, %v460, %v464
      %v471 = vsel %vm469, %v462, %v466
      %v472 = vsel %vm469, %v464, %v460
      %v473 = vsel %vm469, %v466, %v462
      %v474 = vsel %vm458, 1, 0
      %v475 = vperm.slane %v474, 0
      %v476 = vperm.slane %v474, 1
      %vm477 = vcmp.eq.s32.totalorder %v475, 1
      %vm478 = vcmp.eq.s32.totalorder %v476, 1
      %v479 = vsel %vm477, %v472, 0.0
      %v480 = vsel %vm478, %v470, 0.0
      %v481 = vsel %vm477, %v473, 0.0
      %v482 = vsel %vm478, %v471, 0.0
      %vm483 = vcmp.ge.s32.totalorder %v336, 0
      %vm484 = vmand %vm453, %vm483
      %vm485 = vcmp.le.s32.totalorder %v336, 15
      %vm486 = vmand %vm484, %vm485
      %487 = vrot.lane.b32.xlu0 %v446, 16
      %v488 = vpop.permute.xlu0 %487
      %489 = vrot.lane.b32.xlu0 %v448, 16
      %v490 = vpop.permute.xlu0 %489
      %491 = vrot.lane.b32.xlu0 %v447, 16
      %v492 = vpop.permute.xlu0 %491
      %493 = vrot.lane.b32.xlu0 %v449, 16
      %v494 = vpop.permute.xlu0 %493
      %vm495 = vcmp.lt.s32.totalorder %v468, 16
      %v496 = vsel %vm495, %v488, %v492
      %v497 = vsel %vm495, %v490, %v494
      %v498 = vsel %vm495, %v492, %v488
      %v499 = vsel %vm495, %v494, %v490
      %v500 = vsel %vm486, 1, 0
      %v501 = vperm.slane %v500, 0
      %v502 = vperm.slane %v500, 1
      %vm503 = vcmp.eq.s32.totalorder %v501, 1
      %vm504 = vcmp.eq.s32.totalorder %v502, 1
      %v505 = vsel %vm503, %v498, 0.0
      %v506 = vsel %vm504, %v496, 0.0
      %v507 = vsel %vm503, %v499, 0.0
      %v508 = vsel %vm504, %v497, 0.0
      %v509 = vadd.s32 %v336, 1
      %vm510 = vcmp.ge.s32.totalorder %v509, 0
      %vm511 = vmand %vm453, %vm510
      %vm512 = vcmp.le.s32.totalorder %v509, 15
      %vm513 = vmand %vm511, %vm512
      %514 = vrot.lane.b32.xlu0 %v446, 15
      %v515 = vpop.permute.xlu0 %514
      %516 = vrot.lane.b32.xlu0 %v448, 15
      %v517 = vpop.permute.xlu0 %516
      %518 = vrot.lane.b32.xlu0 %v447, 15
      %v519 = vpop.permute.xlu0 %518
      %520 = vrot.lane.b32.xlu0 %v449, 15
      %v521 = vpop.permute.xlu0 %520
      %vm522 = vcmp.lt.s32.totalorder %v468, 15
      %v523 = vsel %vm522, %v515, %v519
      %v524 = vsel %vm522, %v517, %v521
      %v525 = vsel %vm522, %v519, %v515
      %v526 = vsel %vm522, %v521, %v517
      %v527 = vsel %vm513, 1, 0
      %v528 = vperm.slane %v527, 0
      %v529 = vperm.slane %v527, 1
      %vm530 = vcmp.eq.s32.totalorder %v528, 1
      %vm531 = vcmp.eq.s32.totalorder %v529, 1
      %v532 = vsel %vm530, %v525, 0.0
      %v533 = vsel %vm531, %v523, 0.0
      %v534 = vsel %vm530, %v526, 0.0
      %v535 = vsel %vm531, %v524, 0.0
      %vm536 = vcmp.ge.s32.totalorder %v335, 0
      %vm537 = vcmp.le.s32.totalorder %v335, 15
      %vm538 = vmand %vm536, %vm537
      %vm539 = vmand %vm538, %vm455
      %vm540 = vmand %vm539, %vm457
      %541 = vrot.lane.b32.xlu0 %v446, 1
      %v542 = vpop.permute.xlu0 %541
      %543 = vrot.lane.b32.xlu0 %v448, 1
      %v544 = vpop.permute.xlu0 %543
      %545 = vrot.lane.b32.xlu0 %v447, 1
      %v546 = vpop.permute.xlu0 %545
      %547 = vrot.lane.b32.xlu0 %v449, 1
      %v548 = vpop.permute.xlu0 %547
      %vm549 = vcmp.lt.s32.totalorder %v468, 1
      %v550 = vsel %vm549, %v542, %v546
      %v551 = vsel %vm549, %v544, %v548
      %v552 = vsel %vm549, %v546, %v542
      %v553 = vsel %vm549, %v548, %v544
      %v554 = vsel %vm540, 1, 0
      %v555 = vperm.slane %v554, 0
      %v556 = vperm.slane %v554, 1
      %vm557 = vcmp.eq.s32.totalorder %v555, 1
      %vm558 = vcmp.eq.s32.totalorder %v556, 1
      %v559 = vsel %vm557, %v552, 0.0
      %v560 = vsel %vm558, %v550, 0.0
      %v561 = vsel %vm557, %v553, 0.0
      %v562 = vsel %vm558, %v551, 0.0
      %vm563 = vmand %vm538, %vm483
      %vm564 = vmand %vm563, %vm485
      %v565 = vsel %vm564, 1, 0
      %v566 = vperm.slane %v565, 0
      %v567 = vperm.slane %v565, 1
      %vm568 = vcmp.eq.s32.totalorder %v566, 1
      %vm569 = vcmp.eq.s32.totalorder %v567, 1
      %v570 = vsel %vm568, %v446, 0.0
      %v571 = vsel %vm569, %v447, 0.0
      %v572 = vsel %vm568, %v448, 0.0
      %v573 = vsel %vm569, %v449, 0.0
      %vm574 = vmand %vm538, %vm510
      %vm575 = vmand %vm574, %vm512
      %576 = vrot.lane.b32.xlu0 %v446, 127
      %v577 = vpop.permute.xlu0 %576
      %578 = vrot.lane.b32.xlu0 %v448, 127
      %v579 = vpop.permute.xlu0 %578
      %580 = vrot.lane.b32.xlu0 %v447, 127
      %v581 = vpop.permute.xlu0 %580
      %582 = vrot.lane.b32.xlu0 %v449, 127
      %v583 = vpop.permute.xlu0 %582
      %vm584 = vcmp.lt.s32.totalorder %v468, 127
      %v585 = vsel %vm584, %v577, %v581
      %v586 = vsel %vm584, %v579, %v583
      %v587 = vsel %vm584, %v581, %v577
      %v588 = vsel %vm584, %v583, %v579
      %v589 = vsel %vm575, 1, 0
      %v590 = vperm.slane %v589, 0
      %v591 = vperm.slane %v589, 1
      %vm592 = vcmp.eq.s32.totalorder %v590, 1
      %vm593 = vcmp.eq.s32.totalorder %v591, 1
      %v594 = vsel %vm592, %v585, 0.0
      %v595 = vsel %vm593, %v587, 0.0
      %v596 = vsel %vm592, %v586, 0.0
      %v597 = vsel %vm593, %v588, 0.0
      %v598 = vadd.s32 %v335, 1
      %vm599 = vcmp.ge.s32.totalorder %v598, 0
      %vm600 = vcmp.le.s32.totalorder %v598, 15
      %vm601 = vmand %vm599, %vm600
      %vm602 = vmand %vm601, %vm455
      %vm603 = vmand %vm602, %vm457
      %604 = vrot.lane.b32.xlu0 %v446, 113
      %v605 = vpop.permute.xlu0 %604
      %606 = vrot.lane.b32.xlu0 %v448, 113
      %v607 = vpop.permute.xlu0 %606
      %608 = vrot.lane.b32.xlu0 %v447, 113
      %v609 = vpop.permute.xlu0 %608
      %610 = vrot.lane.b32.xlu0 %v449, 113
      %v611 = vpop.permute.xlu0 %610
      %vm612 = vcmp.lt.s32.totalorder %v468, 113
      %v613 = vsel %vm612, %v605, %v609
      %v614 = vsel %vm612, %v607, %v611
      %v615 = vsel %vm612, %v609, %v605
      %v616 = vsel %vm612, %v611, %v607
      %v617 = vsel %vm603, 1, 0
      %v618 = vperm.slane %v617, 0
      %v619 = vperm.slane %v617, 1
      %vm620 = vcmp.eq.s32.totalorder %v618, 1
      %vm621 = vcmp.eq.s32.totalorder %v619, 1
      %v622 = vsel %vm620, %v613, 0.0
      %v623 = vsel %vm621, %v615, 0.0
      %v624 = vsel %vm620, %v614, 0.0
      %v625 = vsel %vm621, %v616, 0.0
      %vm626 = vmand %vm601, %vm483
      %vm627 = vmand %vm626, %vm485
      %628 = vrot.lane.b32.xlu0 %v446, 112
      %v629 = vpop.permute.xlu0 %628
      %630 = vrot.lane.b32.xlu0 %v448, 112
      %v631 = vpop.permute.xlu0 %630
      %632 = vrot.lane.b32.xlu0 %v447, 112
      %v633 = vpop.permute.xlu0 %632
      %634 = vrot.lane.b32.xlu0 %v449, 112
      %v635 = vpop.permute.xlu0 %634
      %vm636 = vcmp.lt.s32.totalorder %v468, 112
      %v637 = vsel %vm636, %v629, %v633
      %v638 = vsel %vm636, %v631, %v635
      %v639 = vsel %vm636, %v633, %v629
      %v640 = vsel %vm636, %v635, %v631
      %v641 = vsel %vm627, 1, 0
      %v642 = vperm.slane %v641, 0
      %v643 = vperm.slane %v641, 1
      %vm644 = vcmp.eq.s32.totalorder %v642, 1
      %vm645 = vcmp.eq.s32.totalorder %v643, 1
      %v646 = vsel %vm644, %v637, 0.0
      %v647 = vsel %vm645, %v639, 0.0
      %v648 = vsel %vm644, %v638, 0.0
      %v649 = vsel %vm645, %v640, 0.0
      %vm650 = vmand %vm601, %vm510
      %vm651 = vmand %vm650, %vm512
      %652 = vrot.lane.b32.xlu0 %v446, 111
      %v653 = vpop.permute.xlu0 %652
      %654 = vrot.lane.b32.xlu0 %v448, 111
      %v655 = vpop.permute.xlu0 %654
      %656 = vrot.lane.b32.xlu0 %v447, 111
      %v657 = vpop.permute.xlu0 %656
      %658 = vrot.lane.b32.xlu0 %v449, 111
      %v659 = vpop.permute.xlu0 %658
      %vm660 = vcmp.lt.s32.totalorder %v468, 111
      %v661 = vsel %vm660, %v653, %v657
      %v662 = vsel %vm660, %v655, %v659
      %v663 = vsel %vm660, %v657, %v653
      %v664 = vsel %vm660, %v659, %v655
      %v665 = vsel %vm651, 1, 0
      %v666 = vperm.slane %v665, 0
      %v667 = vperm.slane %v665, 1
      %vm668 = vcmp.eq.s32.totalorder %v666, 1
      %vm669 = vcmp.eq.s32.totalorder %v667, 1
      %v670 = vsel %vm668, %v661, 0.0
      %v671 = vsel %vm669, %v663, 0.0
      %v672 = vsel %vm668, %v662, 0.0
      %v673 = vsel %vm669, %v664, 0.0
      %v674 = vpack.c.bf16 %v481, %v479
      %v675 = vpack.c.bf16 %v482, %v480
      %v676 = vpack.c.bf16 %v507, %v505
      %v677 = vpack.c.bf16 %v508, %v506
      %v678 = vpack.c.bf16 %v534, %v532
      %v679 = vpack.c.bf16 %v535, %v533
      %v680 = vpack.c.bf16 %v561, %v559
      %v681 = vpack.c.bf16 %v562, %v560
      %v682 = vpack.c.bf16 %v572, %v570
      %v683 = vpack.c.bf16 %v573, %v571
      %v684 = vpack.c.bf16 %v596, %v594
      %v685 = vpack.c.bf16 %v597, %v595
      %v686 = vpack.c.bf16 %v624, %v622
      %v687 = vpack.c.bf16 %v625, %v623
      %v688 = vpack.c.bf16 %v648, %v646
      %v689 = vpack.c.bf16 %v649, %v647
      %v690 = vpack.c.bf16 %v672, %v670
      %v691 = vpack.c.bf16 %v673, %v671
      %v692 = vld [vmem:[%s8] sm:$0xff]
      %v694 = vunpack.c.l.b16 %v692
      %v695 = vunpack.c.h.b16 %v692
      %v696 = vpack.c.b16 %v694, %v694
      %v697 = vpack.c.b16 %v695, %v695
      %vm699 = vcmask 130048
      %v701 = vsel %vm699, %v697, 0
      %703 = vmatpush.bf16.msra.mxu0 %v688
      %704 = vmatpush.bf16.msra.mxu0 %v686
      %705 = vmatpush.bf16.msra.mxu0 %v684
      %706 = vmatpush.bf16.msra.mxu0 %v682
      %707 = vmatpush.bf16.msra.mxu0 %v680
      %708 = vmatpush.bf16.msra.mxu0 %v678
      %709 = vmatpush.bf16.msra.mxu0 %v676
      %710 = vmatpush.bf16.msra.mxu0 %v674
      %711 = vmatmul.bf16.gmra.mxu0 %v696
      %v712 = vpop.f32.mrf.mxu0
      %v713 = vadd.f32 0.0, %v712
      %v714 = vpop.f32.mrf.mxu0
      %715 = vdwg.mxu0
      %716 = vmatpush.bf16.msra.mxu0 0
      %717 = vmatpush.bf16.msra.mxu0 0
      %718 = vmatpush.bf16.msra.mxu0 0
      %719 = vmatpush.bf16.msra.mxu0 0
      %720 = vmatpush.bf16.msra.mxu0 0
      %721 = vmatpush.bf16.msra.mxu0 0
      %722 = vmatpush.bf16.msra.mxu0 0
      %723 = vmatpush.bf16.msra.mxu0 %v690
      %724 = vmatmul.bf16.gmra.mxu0 %v701
      %v725 = vpop.f32.mrf.mxu0
      %v726 = vadd.f32 %v713, %v725
      %v727 = vpop.f32.mrf.mxu0
      %728 = vdwg.mxu0
      %729 = vmatpush.bf16.msra.mxu0 %v689
      %730 = vmatpush.bf16.msra.mxu0 %v687
      %731 = vmatpush.bf16.msra.mxu0 %v685
      %732 = vmatpush.bf16.msra.mxu0 %v683
      %733 = vmatpush.bf16.msra.mxu0 %v681
      %734 = vmatpush.bf16.msra.mxu0 %v679
      %735 = vmatpush.bf16.msra.mxu0 %v677
      %736 = vmatpush.bf16.msra.mxu0 %v675
      %737 = vmatmul.bf16.gmra.mxu0 %v696
      %v738 = vpop.f32.mrf.mxu0
      %v739 = vadd.f32 0.0, %v738
      %v740 = vpop.f32.mrf.mxu0
      %741 = vdwg.mxu0
      %742 = vmatpush.bf16.msra.mxu0 0
      %743 = vmatpush.bf16.msra.mxu0 0
      %744 = vmatpush.bf16.msra.mxu0 0
      %745 = vmatpush.bf16.msra.mxu0 0
      %746 = vmatpush.bf16.msra.mxu0 0
      %747 = vmatpush.bf16.msra.mxu0 0
      %748 = vmatpush.bf16.msra.mxu0 0
      %749 = vmatpush.bf16.msra.mxu0 %v691
      %750 = vmatmul.bf16.gmra.mxu0 %v701
      %v751 = vpop.f32.mrf.mxu0
      %v752 = vadd.f32 %v739, %v751
      %v753 = vpop.f32.mrf.mxu0
      %754 = vdwg.mxu0
      %755 = vst [vmem:[%s332] sm:$0xff] %v726
      %756 = vst [vmem:[%s332 + $0x8] sm:$0xff] %v752
      %758 = vst [vmem:[#allocation1] ss:$2 sm:$0xff] %v334
      %v759 = vld.sshfl [vmem:[#allocation1] sm:$0xff pattern:$0x75316420]
      %v760 = vld.sshfl [vmem:[#allocation1 + $0x8] sm:$0xff pattern:$0x75316420]
      %763 = vst [vmem:[%s332 + $0x10] sm:$0xf] %v759
      %764 = vst [vmem:[%s332 + $0x18] sm:$0xf] %v760
      %p765 = scmp.lt.s32.totalorder %s20, 1
      %s766 = scalar_select %p765, %s20, 1
      %s767 = smul.addr %s766, 4
      %s768 = smul.addr %s767, 8
      %s769 = scalar_lea.vmem %s9, %s768
      // Predicated region
      $region57: #{dense_layer_forward.1} parent=55 // pred_check
        %p770 = pneg %p232
      $region58: #{dense_layer_forward.1} parent=55 // pred_check_branch
        %772 = sbr.rel (%p770) target = $region60
      $region59: #{dense_layer_forward.1} parent=55 // pred_region
        _
      $region60: #{dense_layer_forward.1} parent=55 // pred_fallthru
        _
    $region56: #{dense_layer_forward.1} parent=5 // pred_fallthru
      _
    %p773 = scmp.le.s32.totalorder 2, %s15
    // Predicated region
    $region61: #{dense_layer_forward.1} parent=5 // pred_check
      %p774 = pneg %p773
    $region62: #{dense_layer_forward.1} parent=5 // pred_check_branch
      %776 = sbr.rel (%p774) target = $region64
    $region63: #{dense_layer_forward.1} parent=5 // pred_region
      %s777 = ssub.s32 %s15, 2
      // Predicated region
      $region65: #{dense_layer_forward.1} parent=63 // pred_check
        %p778 = pneg %p238
      $region66: #{dense_layer_forward.1} parent=63 // pred_check_branch
        %780 = sbr.rel (%p778) target = $region68
      $region67: #{dense_layer_forward.1} parent=63 // pred_region
        %p781 = scmp.lt.s32.totalorder %s21, 1
        %s782 = scalar_select %p781, %s21, 1
        %s783 = smul.addr %s782, 4
        %s784 = smul.addr %s783, 8
        %s785 = scalar_lea.vmem %s9, %s784
      $region68: #{dense_layer_forward.1} parent=63 // pred_fallthru
        _
    $region64: #{dense_layer_forward.1} parent=5 // pred_fallthru
      _
  $region6: #{dense_layer_forward.1} parent=0 // loop_footer
    %s19 = sadd.s32 1, %s15
  $region7: #{dense_layer_forward.1} parent=0 // loop_footer_branch
    %14 = sbr.rel target = $region3
  $region8: #{dense_layer_forward.1} parent=0 // loop_exit
    _

</llo_original>
